<compile_context>
chip_gen: v7x
topology: tpu7x:2x2x1
jax: 0.10.0
libtpu: 0.0.40
codegen_flags: <defaults>
</compile_context>

<pallas_src>
import jax
import jax.numpy as jnp
from jax.experimental import pallas as pl
from jax.experimental.pallas import tpu as pltpu

# ---- model hyper-parameters (consistent with the module's __init__) ---------
N_INPUT = 16
N_HIDDEN = 32
N_SHARED = 2
N_SPECIFIC = 1

H2 = 2 * N_HIDDEN            # 64  (fc_inc1 out)
HQ = N_HIDDEN // 2           # 16  (fc_c1c2 out)
H = N_HIDDEN                 # 32
N_OUT = 3                    # per-head output size
N_HEADS = 3                  # farms
OUT_W = N_HEADS * N_OUT      # 9   (fused output width)
FUSED_H = N_HEADS * H        # 96  (fused head width)

_LANE = 128
_SUBLANE = 8


def _round_up(n, m):
    return ((n + m - 1) // m) * m


# ----------------------------------------------------------------------------
# Fused forward math (shared by the Pallas kernel and the small-batch fallback)
# ----------------------------------------------------------------------------
def _fused_apply(x, wb_pairs):
    """wb_pairs: list of (w, b) 2-D arrays in fused-layer order. Returns (B, 9)."""
    it = iter(wb_pairs)

    def lin(a, relu=True):
        w, b = next(it)
        y = jnp.dot(a.astype(w.dtype), w, preferred_element_type=jnp.float32)
        y = y + b.astype(jnp.float32)
        return jnp.maximum(y, 0.0) if relu else y

    c = lin(x)                          # (B, 64)  fc_inc1
    c = lin(c)                          # (B, 16)  fc_c1c2
    c = lin(c)                          # (B, 32)  fc_c2c3
    for _ in range(N_SHARED):
        c = lin(c)                      # (B, 32)  shared layers
    h = lin(c)                          # (B, 96)  fused fc_cfXs1 (3 heads)
    for _ in range(N_SPECIFIC):
        h = lin(h)                      # (B, 96)  fused block-diag specific
    return lin(h, relu=False)           # (B, 9)   fused block-diag output


# ----------------------------------------------------------------------------
# Kernel
# ----------------------------------------------------------------------------
def make_musonet_kernel(layout):
    """layout: tuple of (row_offset, rows, cols) for every weight/bias entry,
    in fused-layer order (w, b, w, b, ...).  All static Python ints."""

    def kernel(x_ref, p_ref, o_ref):
        def entry(off, r, c):
            return p_ref[off:off + r, 0:c]      # static slice of the slab

        wb = [(entry(*layout[i]), entry(*layout[i + 1]))
              for i in range(0, len(layout), 2)]
        o_ref[...] = _fused_apply(x_ref[...], wb).astype(o_ref.dtype)

    return kernel


# ----------------------------------------------------------------------------
# Parameters (natural per-layer form) + packing into the single fused slab
# ----------------------------------------------------------------------------
def init_params(key):
    """Deterministic synthetic parameters with the shapes implied by __init__."""
    def lin(k, fan_in, fan_out):
        kw, kb = jax.random.split(k)
        bound = 1.0 / jnp.sqrt(fan_in)
        w = jax.random.uniform(kw, (fan_in, fan_out), jnp.float32, -bound, bound)
        b = jax.random.uniform(kb, (fan_out,), jnp.float32, -bound, bound)
        return w, b

    keys = iter(jax.random.split(key, 32))
    fc_inc1 = lin(next(keys), N_INPUT, H2)
    fc_c1c2 = lin(next(keys), H2, HQ)
    fc_c2c3 = lin(next(keys), HQ, H)
    shared = [lin(next(keys), H, H) for _ in range(N_SHARED)]
    heads = []
    for _ in range(N_HEADS):
        head_in = lin(next(keys), H, H)                       # fc_cfXs1
        spec = [lin(next(keys), H, H) for _ in range(N_SPECIFIC)]
        out = lin(next(keys), H, N_OUT)                       # fc_out_fX
        heads.append((head_in, spec, out))
    return (fc_inc1, fc_c1c2, fc_c2c3, shared, heads)


def _block_diag(blocks):
    n = len(blocks)
    rows = []
    for i, bi in enumerate(blocks):
        row = [bi if j == i else
               jnp.zeros((bi.shape[0], blocks[j].shape[1]), bi.dtype)
               for j in range(n)]
        rows.append(jnp.concatenate(row, axis=1))
    return jnp.concatenate(rows, axis=0)


def _fused_layers(params):
    """Fuse the 3 farm heads; return ordered list of (w, b) 2-D/1-D arrays."""
    (w_in, b_in), (w_12, b_12), (w_23, b_23) = params[0], params[1], params[2]
    shared, heads = params[3], params[4]
    layers = [(w_in, b_in), (w_12, b_12), (w_23, b_23)]
    layers += list(shared)
    # fused first head layer: (H, 3H)
    layers.append((jnp.concatenate([h[0][0] for h in heads], axis=1),
                   jnp.concatenate([h[0][1] for h in heads], axis=0)))
    # fused (block-diagonal) farm-specific layers: (3H, 3H)
    for s in range(N_SPECIFIC):
        layers.append((_block_diag([h[1][s][0] for h in heads]),
                       jnp.concatenate([h[1][s][1] for h in heads], axis=0)))
    # fused (block-diagonal) output layer: (3H, 9)
    layers.append((_block_diag([h[2][0] for h in heads]),
                   jnp.concatenate([h[2][1] for h in heads], axis=0)))
    return layers


def pack_params(params, dtype=jnp.float32):
    """Pack ALL fused weights & biases into ONE (rows, 128) parameter slab.

    Each entry starts on an 8-row (sublane) boundary so in-kernel static slices
    stay tile-aligned.  Pass dtype=jnp.bfloat16 for bf16 weight storage
    (f32 accumulation in the kernel).  Returns (slab, layout)."""
    layers = _fused_layers(params)
    entries = []
    for w, b in layers:
        entries.append(w)
        entries.append(b[None, :])
    width = _round_up(max(e.shape[1] for e in entries), _LANE)   # 128 here
    layout, blocks, off = [], [], 0
    for e in entries:
        r, c = e.shape
        r_pad = _round_up(r, _SUBLANE)
        blk = jnp.zeros((r_pad, width), dtype).at[:r, :c].set(e.astype(dtype))
        blocks.append(blk)
        layout.append((off, r, c))
        off += r_pad
    slab = jnp.concatenate(blocks, axis=0)
    return slab, tuple(layout)


def _slab_pairs(slab, layout):
    entries = [slab[off:off + r, :c] for off, r, c in layout]
    return list(zip(entries[0::2], entries[1::2]))


def _forward_jnp(x, slab, layout):
    """Plain-XLA fused forward from the slab (small-batch fallback)."""
    return _fused_apply(x, _slab_pairs(slab, layout))


# ----------------------------------------------------------------------------
# Wrapper
# ----------------------------------------------------------------------------
def musonet_forward(x, slab, layout, *, tb=256, small_batch_fallback=64,
                    use_pallas=None):
    """x: (B, N_INPUT).  Returns (B, 3, 3) float32, row f = farm f logits."""
    B = x.shape[0]
    if use_pallas is None:
        use_pallas = B > small_batch_fallback
    if not use_pallas:
        # Tiny batches are pure launch + DMA-prologue latency for a pallas_call;
        # XLA fuses this small MLP fine.
        y = _forward_jnp(x, slab, layout).astype(jnp.float32)
        return y.reshape(B, N_HEADS, N_OUT)

    # Batch tile: large (amortizes ~0.35us/step grid overhead), multiple of 8,
    # capped so n_blocks >= 2 when possible (keeps both v7x TensorCores busy).
    TB = max(_SUBLANE, min(tb, _round_up(-(-B // 2), _SUBLANE)))
    n_blocks = -(-B // TB)
    B_pad = n_blocks * TB
    if B_pad != B:
        x = jnp.pad(x, ((0, B_pad - B), (0, 0)))     # padded rows sliced off below

    # VMEM budget: in/out blocks lane-pad to 128 and are double-buffered; the
    # parameter slab is resident (constant index_map => fetched once); leave
    # headroom for the <=96-wide intermediates.  Clamp to 56 MiB (v7x physical
    # VMEM is 64 MiB); v5e/v6e have 128 MiB so this is always safe.
    est = (2 * TB * _LANE * (x.dtype.itemsize + 4)          # x + out, dbl-buffered
           + 8 * TB * _LANE * 4                             # intermediates headroom
           + 2 * slab.size * slab.dtype.itemsize)
    vmem_limit = int(min(56 << 20, max(32 << 20, 2 * est)))

    weight_flops = 2 * sum(r * c for (_, r, c) in layout[0::2])
    cost = pl.CostEstimate(
        flops=weight_flops * B_pad,
        transcendentals=0,
        bytes_accessed=int(B_pad * (N_INPUT * x.dtype.itemsize + OUT_W * 4)
                           + slab.size * slab.dtype.itemsize))

    out = pl.pallas_call(
        make_musonet_kernel(layout),
        out_shape=jax.ShapeDtypeStruct((B_pad, OUT_W), jnp.float32),
        grid_spec=pltpu.PrefetchScalarGridSpec(
            num_scalar_prefetch=0,
            grid=(n_blocks,),
            in_specs=[
                pl.BlockSpec((TB, N_INPUT), lambda i: (i, 0)),
                # Single resident parameter slab: constant block index => one
                # DMA for the whole parameter set, reused by every grid step.
                pl.BlockSpec(slab.shape, lambda i: (0, 0)),
            ],
            out_specs=pl.BlockSpec((TB, OUT_W), lambda i: (i, 0)),
        ),
        compiler_params=pltpu.CompilerParams(
            dimension_semantics=("parallel",),
            vmem_limit_bytes=vmem_limit),
        cost_estimate=cost,
    )(x, slab)

    # (B, 9) -> (B, 3, 3): row f = head f, same as the torch.ones(...) fill.
    return out[:B].reshape(B, N_HEADS, N_OUT)


# ----------------------------------------------------------------------------
# Pure-JAX reference (un-fused, mirrors the PyTorch module at eval time)
# ----------------------------------------------------------------------------
def _reference(x, params):
    (w_in, b_in), (w_12, b_12), (w_23, b_23) = params[0], params[1], params[2]
    shared, heads = params[3], params[4]
    act = lambda z: jnp.maximum(z, 0.0)
    c = act(x @ w_in + b_in)
    c = act(c @ w_12 + b_12)
    c = act(c @ w_23 + b_23)
    for w, b in shared:
        c = act(c @ w + b)
    outs = []
    for (w_h, b_h), spec, (w_o, b_o) in heads:
        h = act(c @ w_h + b_h)
        for w, b in spec:
            h = act(h @ w + b)
        outs.append(h @ w_o + b_o)
    return jnp.stack(outs, axis=1)                       # (B, 3, 3)


if __name__ == "__main__":
    key = jax.random.PRNGKey(0)
    kx, kp = jax.random.split(key)
    params = init_params(kp)

    slab_f32, layout = pack_params(params, dtype=jnp.float32)
    slab_bf16, _ = pack_params(params, dtype=jnp.bfloat16)

    # 1) module-sized batch (B=8): auto-dispatch uses the fused jnp fallback.
    x_small = jax.random.normal(kx, (8, N_INPUT), jnp.float32)
    ref_small = _reference(x_small, params)
    out_small = jax.block_until_ready(musonet_forward(x_small, slab_f32, layout))
    assert out_small.shape == (8, N_HEADS, N_OUT), out_small.shape
    assert jnp.allclose(out_small, ref_small, atol=1e-5, rtol=1e-5), \
        "fallback path mismatch vs reference"

    # 2) same tiny batch forced through the Pallas kernel (single block).
    out_small_pl = jax.block_until_ready(
        musonet_forward(x_small, slab_f32, layout, use_pallas=True))
    assert jnp.allclose(out_small_pl, ref_small, atol=1e-5, rtol=1e-5), \
        "Pallas (small batch) mismatch vs reference"

    # 3) production-ish batch through the Pallas path (2 parallel grid blocks).
    xb = jax.random.normal(jax.random.PRNGKey(1), (512, N_INPUT), jnp.float32)
    ref_b = _reference(xb, params)
    out_b = jax.block_until_ready(musonet_forward(xb, slab_f32, layout, tb=256))
    assert out_b.shape == (512, N_HEADS, N_OUT), out_b.shape
    assert jnp.allclose(out_b, ref_b, atol=1e-5, rtol=1e-5), \
        "Pallas (B=512) mismatch vs reference"

    # 4) ragged batch with bf16 streaming (x + weights bf16, f32 accumulate).
    xr = jax.random.normal(jax.random.PRNGKey(2), (300, N_INPUT), jnp.float32)
    ref_r = _reference(xr, params)
    out_r = jax.block_until_ready(
        musonet_forward(xr.astype(jnp.bfloat16), slab_bf16, layout, tb=256))
    assert out_r.shape == (300, N_HEADS, N_OUT), out_r.shape
    assert jnp.allclose(out_r, ref_r, atol=1e-1, rtol=1e-1), \
        "Pallas (bf16) mismatch vs reference (loose tolerance)"

    print("KERNEL_OK")
</pallas_src>

<mosaic_0001>
module attributes {stable_mosaic.version = 11 : i64} {
  func.func @kernel(%arg0: i32, %arg1: memref<8x16xf32, #tpu.memory_space<vmem>>, %arg2: memref<448x128xf32, #tpu.memory_space<vmem>>, %arg3: memref<8x9xf32, #tpu.memory_space<vmem>>) attributes {dimension_semantics = [#tpu.dimension_semantics<parallel>], iteration_bounds = array<i64: 1>, scalar_prefetch = 0 : i64, scratch_operands = 0 : i64, tpu.core_type = #tpu.core_type<tc>, window_params = [{transform_indices = @transform_0, window_bounds = array<i64: 8, 16>}, {pipeline_mode = #tpu.pipeline_mode<synchronous>, transform_indices = @transform_1, window_bounds = array<i64: 448, 128>}, {transform_indices = @transform_2, window_bounds = array<i64: 8, 9>}]} {
    %c0 = arith.constant 0 : index
    %c0_0 = arith.constant 0 : index
    %0 = vector.load %arg2[%c0, %c0_0] : memref<448x128xf32, #tpu.memory_space<vmem>>, vector<16x64xf32>
    %c16 = arith.constant 16 : index
    %c0_1 = arith.constant 0 : index
    %1 = vector.load %arg2[%c16, %c0_1] : memref<448x128xf32, #tpu.memory_space<vmem>>, vector<1x64xf32>
    %c24 = arith.constant 24 : index
    %c0_2 = arith.constant 0 : index
    %2 = vector.load %arg2[%c24, %c0_2] : memref<448x128xf32, #tpu.memory_space<vmem>>, vector<64x16xf32>
    %c88 = arith.constant 88 : index
    %c0_3 = arith.constant 0 : index
    %3 = vector.load %arg2[%c88, %c0_3] : memref<448x128xf32, #tpu.memory_space<vmem>>, vector<1x16xf32>
    %c96 = arith.constant 96 : index
    %c0_4 = arith.constant 0 : index
    %4 = vector.load %arg2[%c96, %c0_4] : memref<448x128xf32, #tpu.memory_space<vmem>>, vector<16x32xf32>
    %c112 = arith.constant 112 : index
    %c0_5 = arith.constant 0 : index
    %5 = vector.load %arg2[%c112, %c0_5] : memref<448x128xf32, #tpu.memory_space<vmem>>, vector<1x32xf32>
    %c120 = arith.constant 120 : index
    %c0_6 = arith.constant 0 : index
    %6 = vector.load %arg2[%c120, %c0_6] : memref<448x128xf32, #tpu.memory_space<vmem>>, vector<32x32xf32>
    %c152 = arith.constant 152 : index
    %c0_7 = arith.constant 0 : index
    %7 = vector.load %arg2[%c152, %c0_7] : memref<448x128xf32, #tpu.memory_space<vmem>>, vector<1x32xf32>
    %c160 = arith.constant 160 : index
    %c0_8 = arith.constant 0 : index
    %8 = vector.load %arg2[%c160, %c0_8] : memref<448x128xf32, #tpu.memory_space<vmem>>, vector<32x32xf32>
    %c192 = arith.constant 192 : index
    %c0_9 = arith.constant 0 : index
    %9 = vector.load %arg2[%c192, %c0_9] : memref<448x128xf32, #tpu.memory_space<vmem>>, vector<1x32xf32>
    %c200 = arith.constant 200 : index
    %c0_10 = arith.constant 0 : index
    %10 = vector.load %arg2[%c200, %c0_10] : memref<448x128xf32, #tpu.memory_space<vmem>>, vector<32x96xf32>
    %c232 = arith.constant 232 : index
    %c0_11 = arith.constant 0 : index
    %11 = vector.load %arg2[%c232, %c0_11] : memref<448x128xf32, #tpu.memory_space<vmem>>, vector<1x96xf32>
    %c240 = arith.constant 240 : index
    %c0_12 = arith.constant 0 : index
    %12 = vector.load %arg2[%c240, %c0_12] : memref<448x128xf32, #tpu.memory_space<vmem>>, vector<96x96xf32>
    %c336 = arith.constant 336 : index
    %c0_13 = arith.constant 0 : index
    %13 = vector.load %arg2[%c336, %c0_13] : memref<448x128xf32, #tpu.memory_space<vmem>>, vector<1x96xf32>
    %c344 = arith.constant 344 : index
    %c0_14 = arith.constant 0 : index
    %14 = vector.load %arg2[%c344, %c0_14] : memref<448x128xf32, #tpu.memory_space<vmem>>, vector<96x9xf32>
    %c440 = arith.constant 440 : index
    %c0_15 = arith.constant 0 : index
    %15 = vector.load %arg2[%c440, %c0_15] : memref<448x128xf32, #tpu.memory_space<vmem>>, vector<1x9xf32>
    %c0_16 = arith.constant 0 : index
    %c0_17 = arith.constant 0 : index
    %16 = vector.load %arg1[%c0_16, %c0_17] : memref<8x16xf32, #tpu.memory_space<vmem>>, vector<8x16xf32>
    %cst = arith.constant dense<0.000000e+00> : vector<8x64xf32>
    %17 = tpu.matmul %16, %0, %cst {dimension_numbers = #tpu.dot_dimension_numbers<[1], [0], [0], [1], [0, 0, 1, 1], [], []>} : vector<8x16xf32>, vector<16x64xf32>, vector<8x64xf32> -> vector<8x64xf32>
    %18 = vector.broadcast %1 : vector<1x64xf32> to vector<8x64xf32>
    %19 = arith.addf %17, %18 : vector<8x64xf32>
    %cst_18 = arith.constant 0.000000e+00 : f32
    %20 = vector.broadcast %cst_18 : f32 to vector<8x64xf32>
    %21 = arith.maximumf %19, %20 : vector<8x64xf32>
    %cst_19 = arith.constant dense<0.000000e+00> : vector<8x16xf32>
    %22 = tpu.matmul %21, %2, %cst_19 {dimension_numbers = #tpu.dot_dimension_numbers<[1], [0], [0], [1], [0, 0, 1, 1], [], []>} : vector<8x64xf32>, vector<64x16xf32>, vector<8x16xf32> -> vector<8x16xf32>
    %23 = vector.broadcast %3 : vector<1x16xf32> to vector<8x16xf32>
    %24 = arith.addf %22, %23 : vector<8x16xf32>
    %cst_20 = arith.constant 0.000000e+00 : f32
    %25 = vector.broadcast %cst_20 : f32 to vector<8x16xf32>
    %26 = arith.maximumf %24, %25 : vector<8x16xf32>
    %cst_21 = arith.constant dense<0.000000e+00> : vector<8x32xf32>
    %27 = tpu.matmul %26, %4, %cst_21 {dimension_numbers = #tpu.dot_dimension_numbers<[1], [0], [0], [1], [0, 0, 1, 1], [], []>} : vector<8x16xf32>, vector<16x32xf32>, vector<8x32xf32> -> vector<8x32xf32>
    %28 = vector.broadcast %5 : vector<1x32xf32> to vector<8x32xf32>
    %29 = arith.addf %27, %28 : vector<8x32xf32>
    %cst_22 = arith.constant 0.000000e+00 : f32
    %30 = vector.broadcast %cst_22 : f32 to vector<8x32xf32>
    %31 = arith.maximumf %29, %30 : vector<8x32xf32>
    %cst_23 = arith.constant dense<0.000000e+00> : vector<8x32xf32>
    %32 = tpu.matmul %31, %6, %cst_23 {dimension_numbers = #tpu.dot_dimension_numbers<[1], [0], [0], [1], [0, 0, 1, 1], [], []>} : vector<8x32xf32>, vector<32x32xf32>, vector<8x32xf32> -> vector<8x32xf32>
    %33 = vector.broadcast %7 : vector<1x32xf32> to vector<8x32xf32>
    %34 = arith.addf %32, %33 : vector<8x32xf32>
    %cst_24 = arith.constant 0.000000e+00 : f32
    %35 = vector.broadcast %cst_24 : f32 to vector<8x32xf32>
    %36 = arith.maximumf %34, %35 : vector<8x32xf32>
    %cst_25 = arith.constant dense<0.000000e+00> : vector<8x32xf32>
    %37 = tpu.matmul %36, %8, %cst_25 {dimension_numbers = #tpu.dot_dimension_numbers<[1], [0], [0], [1], [0, 0, 1, 1], [], []>} : vector<8x32xf32>, vector<32x32xf32>, vector<8x32xf32> -> vector<8x32xf32>
    %38 = vector.broadcast %9 : vector<1x32xf32> to vector<8x32xf32>
    %39 = arith.addf %37, %38 : vector<8x32xf32>
    %cst_26 = arith.constant 0.000000e+00 : f32
    %40 = vector.broadcast %cst_26 : f32 to vector<8x32xf32>
    %41 = arith.maximumf %39, %40 : vector<8x32xf32>
    %cst_27 = arith.constant dense<0.000000e+00> : vector<8x96xf32>
    %42 = tpu.matmul %41, %10, %cst_27 {dimension_numbers = #tpu.dot_dimension_numbers<[1], [0], [0], [1], [0, 0, 1, 1], [], []>} : vector<8x32xf32>, vector<32x96xf32>, vector<8x96xf32> -> vector<8x96xf32>
    %43 = vector.broadcast %11 : vector<1x96xf32> to vector<8x96xf32>
    %44 = arith.addf %42, %43 : vector<8x96xf32>
    %cst_28 = arith.constant 0.000000e+00 : f32
    %45 = vector.broadcast %cst_28 : f32 to vector<8x96xf32>
    %46 = arith.maximumf %44, %45 : vector<8x96xf32>
    %cst_29 = arith.constant dense<0.000000e+00> : vector<8x96xf32>
    %47 = tpu.matmul %46, %12, %cst_29 {dimension_numbers = #tpu.dot_dimension_numbers<[1], [0], [0], [1], [0, 0, 1, 1], [], []>} : vector<8x96xf32>, vector<96x96xf32>, vector<8x96xf32> -> vector<8x96xf32>
    %48 = vector.broadcast %13 : vector<1x96xf32> to vector<8x96xf32>
    %49 = arith.addf %47, %48 : vector<8x96xf32>
    %cst_30 = arith.constant 0.000000e+00 : f32
    %50 = vector.broadcast %cst_30 : f32 to vector<8x96xf32>
    %51 = arith.maximumf %49, %50 : vector<8x96xf32>
    %cst_31 = arith.constant dense<0.000000e+00> : vector<8x9xf32>
    %52 = tpu.matmul %51, %14, %cst_31 {dimension_numbers = #tpu.dot_dimension_numbers<[1], [0], [0], [1], [0, 0, 1, 1], [], []>} : vector<8x96xf32>, vector<96x9xf32>, vector<8x9xf32> -> vector<8x9xf32>
    %53 = vector.broadcast %15 : vector<1x9xf32> to vector<8x9xf32>
    %54 = arith.addf %52, %53 : vector<8x9xf32>
    %c0_32 = arith.constant 0 : index
    %c0_33 = arith.constant 0 : index
    %55 = vector.load %arg3[%c0_32, %c0_33] : memref<8x9xf32, #tpu.memory_space<vmem>>, vector<8x9xf32>
    tpu.vector_store %arg3[%c0_32, %c0_33], %54 {strides = array<i32>} : memref<8x9xf32, #tpu.memory_space<vmem>>, vector<8x9xf32>,
    return
  }
  func.func @transform_0(%arg0: i32) -> (i32, i32) {
    %c0_i32 = arith.constant 0 : i32
    %c0_i32_0 = arith.constant 0 : i32
    return %arg0, %c0_i32 : i32, i32
  }
  func.func @transform_1(%arg0: i32) -> (i32, i32) {
    %c0_i32 = arith.constant 0 : i32
    %c0_i32_0 = arith.constant 0 : i32
    %c0_i32_1 = arith.constant 0 : i32
    return %c0_i32, %c0_i32_0 : i32, i32
  }
  func.func @transform_2(%arg0: i32) -> (i32, i32) {
    %c0_i32 = arith.constant 0 : i32
    %c0_i32_0 = arith.constant 0 : i32
    return %arg0, %c0_i32 : i32, i32
  }
}

</mosaic_0001>

<llo_original>
// kernel: tpu_custom_call.1
$region0: #{tpu_custom_call.1}
  #allocation0 [shape = 'u32[]', space=smem, size = 0x4, offset = 0x4, fixed_abs, tag = 'smem constant byte address 0x4 - core index']
  #allocation1 [shape = 'u32[144,128]{1,0:T(1,128)}', space=vmem, size = 0x12000, scoped, tag = 'internal scratch']
  %s0 = inlined_call_operand.hbm [shape: f32[8,16], index: 0, kind: input, shape index: {}]
  %s1 = inlined_call_operand.hbm [shape: f32[448,128], index: 1, kind: input, shape index: {}]
  %s2 = inlined_call_operand.hbm [shape: f32[8,9], index: 2, kind: output, shape index: {}]
  %s3 = sld [smem:[#allocation0]]
  $region26: #{tpu_custom_call.1} parent=0
    _
  %s5 = ssub.s32 1, %s3
  %s6 = scalar_select 0, %s5, %s3
  $region1: #{tpu_custom_call.1} parent=0
    #allocation2 [shape = 'u8[4096]{0}', space=vmem, size = 0x1000, scoped, tag = 'input window, operand 0, single buffered']
    #allocation3 [shape = 's32[1]{0}', space=sflag, size = 0x4, scoped, tag = 'scoped memory for tpu_custom_call.1']
    #allocation4 [shape = 's32[1]{0}', space=sflag, size = 0x4, scoped, tag = 'scoped memory for tpu_custom_call.1']
    #allocation5 [shape = 'u8[229376]{0}', space=vmem, size = 0x38000, scoped, tag = 'input window, operand 1, single buffered']
    #allocation6 [shape = 's32[1]{0}', space=sflag, size = 0x4, scoped, tag = 'scoped memory for tpu_custom_call.1']
    #allocation7 [shape = 'u8[4096]{0}', space=vmem, size = 0x1000, scoped, tag = 'output window, operand 0, single buffered']
    %7 = vsyncpa [#allocation3], 0
    %8 = vsyncpa [#allocation6], 0
    %9 = vsyncpa [#allocation4], 0
    // Predicated region
    $region2: #{tpu_custom_call.1} parent=1 // pred_check
      _
    $region3: #{tpu_custom_call.1} parent=1 // pred_check_branch
      %11 = sbr.rel (0) target = $region5
    $region4: #{tpu_custom_call.1} parent=1 // pred_region
      %s13 = ssub.s32 128, 128
      %14 = vsyncadd [#allocation3], %s13
      %s16 = sshll.u32 [#allocation2], 4
      %s17 = int_to_ptr.vmem [resolvable:$true] %s16
      %19 = dma.hbm_to_vmem [thread:$0]  %s0, 128, %s17, [#allocation3]
    $region5: #{tpu_custom_call.1} parent=1 // pred_fallthru
      _
    // Predicated region
    $region6: #{tpu_custom_call.1} parent=1 // pred_check
      _
    $region7: #{tpu_custom_call.1} parent=1 // pred_check_branch
      %21 = sbr.rel (0) target = $region9
    $region8: #{tpu_custom_call.1} parent=1 // pred_region
      %s23 = ssub.s32 7168, 7168
      %24 = vsyncadd [#allocation6], %s23
      %s25 = sshll.u32 [#allocation5], 4
      %s26 = int_to_ptr.vmem [resolvable:$true] %s25
      %31 = dma.hbm_to_vmem [thread:$0]  %s1, 7168, %s26, [#allocation6], 128, 128, 8
    $region9: #{tpu_custom_call.1} parent=1 // pred_fallthru
      _
    // Predicated region
    $region10: #{tpu_custom_call.1} parent=1 // pred_check
      _
    $region11: #{tpu_custom_call.1} parent=1 // pred_check_branch
      %33 = sbr.rel (0) target = $region13
    $region12: #{tpu_custom_call.1} parent=1 // pred_region
      %34 = dma.done [#allocation3], 128
    $region13: #{tpu_custom_call.1} parent=1 // pred_fallthru
      _
    // Predicated region
    $region14: #{tpu_custom_call.1} parent=1 // pred_check
      _
    $region15: #{tpu_custom_call.1} parent=1 // pred_check_branch
      %36 = sbr.rel (0) target = $region17
    $region16: #{tpu_custom_call.1} parent=1 // pred_region
      %37 = dma.done [#allocation6], 7168
    $region17: #{tpu_custom_call.1} parent=1 // pred_fallthru
      _
    %v38 = vld [vmem:[#allocation5] sm:$0xff]
    %v39 = vld [vmem:[#allocation5 + $0x8] sm:$0xff]
    %v40 = vld [vmem:[#allocation5 + $0x10] sm:$0x1]
    %v41 = vld [vmem:[#allocation5 + $0x18] sm:$0xff]
    %v42 = vld [vmem:[#allocation5 + $0x20] sm:$0xff]
    %v43 = vld [vmem:[#allocation5 + $0x28] sm:$0xff]
    %v44 = vld [vmem:[#allocation5 + $0x30] sm:$0xff]
    %v45 = vld [vmem:[#allocation5 + $0x38] sm:$0xff]
    %v46 = vld [vmem:[#allocation5 + $0x40] sm:$0xff]
    %v47 = vld [vmem:[#allocation5 + $0x48] sm:$0xff]
    %v48 = vld [vmem:[#allocation5 + $0x50] sm:$0xff]
    %v49 = vld [vmem:[#allocation5 + $0x58] sm:$0x1]
    %v50 = vld [vmem:[#allocation5 + $0x60] sm:$0xff]
    %v51 = vld [vmem:[#allocation5 + $0x68] sm:$0xff]
    %v52 = vld [vmem:[#allocation5 + $0x70] sm:$0x1]
    %v53 = vld [vmem:[#allocation5 + $0x78] sm:$0xff]
    %v54 = vld [vmem:[#allocation5 + $0x80] sm:$0xff]
    %v55 = vld [vmem:[#allocation5 + $0x88] sm:$0xff]
    %v56 = vld [vmem:[#allocation5 + $0x90] sm:$0xff]
    %v57 = vld [vmem:[#allocation5 + $0x98] sm:$0x1]
    %v58 = vld [vmem:[#allocation5 + $0xa0] sm:$0xff]
    %v59 = vld [vmem:[#allocation5 + $0xa8] sm:$0xff]
    %v60 = vld [vmem:[#allocation5 + $0xb0] sm:$0xff]
    %v61 = vld [vmem:[#allocation5 + $0xb8] sm:$0xff]
    %v62 = vld [vmem:[#allocation5 + $0xc0] sm:$0x1]
    %v63 = vld [vmem:[#allocation5 + $0xc8] sm:$0xff]
    %v64 = vld [vmem:[#allocation5 + $0xd0] sm:$0xff]
    %v65 = vld [vmem:[#allocation5 + $0xd8] sm:$0xff]
    %v66 = vld [vmem:[#allocation5 + $0xe0] sm:$0xff]
    %v67 = vld [vmem:[#allocation5 + $0xe8] sm:$0x1]
    %v68 = vld [vmem:[#allocation5 + $0xf0] sm:$0xff]
    %v69 = vld [vmem:[#allocation5 + $0xf8] sm:$0xff]
    %v70 = vld [vmem:[#allocation5 + $0x100] sm:$0xff]
    %v71 = vld [vmem:[#allocation5 + $0x108] sm:$0xff]
    %v72 = vld [vmem:[#allocation5 + $0x110] sm:$0xff]
    %v73 = vld [vmem:[#allocation5 + $0x118] sm:$0xff]
    %v74 = vld [vmem:[#allocation5 + $0x120] sm:$0xff]
    %v75 = vld [vmem:[#allocation5 + $0x128] sm:$0xff]
    %v76 = vld [vmem:[#allocation5 + $0x130] sm:$0xff]
    %v77 = vld [vmem:[#allocation5 + $0x138] sm:$0xff]
    %v78 = vld [vmem:[#allocation5 + $0x140] sm:$0xff]
    %v79 = vld [vmem:[#allocation5 + $0x148] sm:$0xff]
    %v80 = vld [vmem:[#allocation5 + $0x150] sm:$0x1]
    %v81 = vld [vmem:[#allocation5 + $0x158] sm:$0xff]
    %v82 = vld [vmem:[#allocation5 + $0x160] sm:$0xff]
    %v83 = vld [vmem:[#allocation5 + $0x168] sm:$0xff]
    %v84 = vld [vmem:[#allocation5 + $0x170] sm:$0xff]
    %v85 = vld [vmem:[#allocation5 + $0x178] sm:$0xff]
    %v86 = vld [vmem:[#allocation5 + $0x180] sm:$0xff]
    %v87 = vld [vmem:[#allocation5 + $0x188] sm:$0xff]
    %v88 = vld [vmem:[#allocation5 + $0x190] sm:$0xff]
    %v89 = vld [vmem:[#allocation5 + $0x198] sm:$0xff]
    %v90 = vld [vmem:[#allocation5 + $0x1a0] sm:$0xff]
    %v91 = vld [vmem:[#allocation5 + $0x1a8] sm:$0xff]
    %v92 = vld [vmem:[#allocation5 + $0x1b0] sm:$0xff]
    %v93 = vld [vmem:[#allocation5 + $0x1b8] sm:$0x1]
    %v94 = vld [vmem:[#allocation2] sm:$0xff]
    %v95 = vlaneseq
    %v96 = vshrl.u32 %v95, 7
    %v97 = vsub.s32 0, %v96
    %v98 = vrot.slane %v40, %v97
    %vm99 = vcmask 130048
    %v101 = vsel %vm99, %v94, 0
    %103 = vmatprep.subr.mxu0 0.0
    %104 = vmatpush1.msra.mxu0 %v38
    %105 = vmatprep.subr.mxu0 0.0
    %106 = vmatpush1.msra.mxu0 %v39
    %107 = vmatprep.subr.mxu0 0.0
    %108 = vmatpush1.msra.mxu0 0.0
    %109 = vmatprep.subr.mxu0 0.0
    %110 = vmatpush1.msra.mxu0 0.0
    %111 = vmatprep.subr.mxu0 0.0
    %112 = vmatpush1.msra.mxu0 0.0
    %113 = vmatprep.subr.mxu0 0.0
    %114 = vmatpush1.msra.mxu0 0.0
    %115 = vmatprep.subr.mxu0 0.0
    %116 = vmatpush1.msra.mxu0 0.0
    %117 = vmatprep.subr.mxu0 0.0
    %118 = vmatpush1.msra.mxu0 0.0
    %119 = vmatprep.subr.mxu0 0.0
    %120 = vmatpush1.msra.mxu0 0.0
    %121 = vmatprep.subr.mxu0 0.0
    %122 = vmatpush1.msra.mxu0 0.0
    %123 = vmatprep.subr.mxu0 0.0
    %124 = vmatpush1.msra.mxu0 0.0
    %125 = vmatprep.subr.mxu0 0.0
    %126 = vmatpush1.msra.mxu0 0.0
    %127 = vmatprep.subr.mxu0 0.0
    %128 = vmatpush1.msra.mxu0 0.0
    %129 = vmatprep.subr.mxu0 0.0
    %130 = vmatpush1.msra.mxu0 0.0
    %131 = vmatprep.subr.mxu0 0.0
    %132 = vmatpush1.msra.mxu0 0.0
    %133 = vmatprep.subr.mxu0 0.0
    %134 = vmatpush1.msra.mxu0 0.0
    %135 = vmatprep.subr.mxu0 0.0
    %136 = vmatpush1.msra.mxu0 0.0
    %137 = vmatprep.subr.mxu0 0.0
    %138 = vmatpush1.msra.mxu0 0.0
    %139 = vmatprep.subr.mxu0 0.0
    %140 = vmatpush1.msra.mxu0 0.0
    %141 = vmatprep.subr.mxu0 0.0
    %142 = vmatpush1.msra.mxu0 0.0
    %143 = vmatprep.subr.mxu0 0.0
    %144 = vmatpush1.msra.mxu0 0.0
    %145 = vmatprep.subr.mxu0 0.0
    %146 = vmatpush1.msra.mxu0 0.0
    %147 = vmatprep.subr.mxu0 0.0
    %148 = vmatpush1.msra.mxu0 0.0
    %149 = vmatprep.subr.mxu0 0.0
    %150 = vmatpush1.msra.mxu0 0.0
    %151 = vmatprep.subr.mxu0 0.0
    %152 = vmatpush1.msra.mxu0 0.0
    %153 = vmatprep.subr.mxu0 0.0
    %154 = vmatpush1.msra.mxu0 0.0
    %155 = vmatprep.subr.mxu0 0.0
    %156 = vmatpush1.msra.mxu0 0.0
    %157 = vmatprep.subr.mxu0 0.0
    %158 = vmatpush1.msra.mxu0 0.0
    %159 = vmatprep.subr.mxu0 0.0
    %160 = vmatpush1.msra.mxu0 0.0
    %161 = vmatprep.subr.mxu0 0.0
    %162 = vmatpush1.msra.mxu0 0.0
    %163 = vmatprep.subr.mxu0 0.0
    %164 = vmatpush1.msra.mxu0 0.0
    %165 = vmatprep.subr.mxu0 0.0
    %166 = vmatpush1.msra.mxu0 0.0
    %167 = vmatprep.mubr.f32.mxu0 0.0
    %168 = vmatmul.mubr.f32.gmra.mrb[0].mxu0 %v101
    %v169 = vpop.f32.mrb[0].mxu0
    %v170 = vadd.f32 %v98, %v169
    %v171 = vpop.f32.mrb[0].mxu0
    %172 = vdwg.mxu0
    %v173 = vmax.f32 %v170, 0.0
    %v174 = vlaneseq
    %v175 = vshrl.u32 %v174, 7
    %v176 = vsub.s32 0, %v175
    %v177 = vrot.slane %v49, %v176
    %vm178 = vcmask 523264
    %v180 = vsel %vm178, %v173, 0
    %182 = vmatprep.subr.mxu0 0.0
    %183 = vmatpush1.msra.mxu0 %v41
    %184 = vmatprep.subr.mxu0 0.0
    %185 = vmatpush1.msra.mxu0 %v42
    %186 = vmatprep.subr.mxu0 0.0
    %187 = vmatpush1.msra.mxu0 %v43
    %188 = vmatprep.subr.mxu0 0.0
    %189 = vmatpush1.msra.mxu0 %v44
    %190 = vmatprep.subr.mxu0 0.0
    %191 = vmatpush1.msra.mxu0 %v45
    %192 = vmatprep.subr.mxu0 0.0
    %193 = vmatpush1.msra.mxu0 %v46
    %194 = vmatprep.subr.mxu0 0.0
    %195 = vmatpush1.msra.mxu0 %v47
    %196 = vmatprep.subr.mxu0 0.0
    %197 = vmatpush1.msra.mxu0 %v48
    %198 = vmatprep.subr.mxu0 0.0
    %199 = vmatpush1.msra.mxu0 0.0
    %200 = vmatprep.subr.mxu0 0.0
    %201 = vmatpush1.msra.mxu0 0.0
    %202 = vmatprep.subr.mxu0 0.0
    %203 = vmatpush1.msra.mxu0 0.0
    %204 = vmatprep.subr.mxu0 0.0
    %205 = vmatpush1.msra.mxu0 0.0
    %206 = vmatprep.subr.mxu0 0.0
    %207 = vmatpush1.msra.mxu0 0.0
    %208 = vmatprep.subr.mxu0 0.0
    %209 = vmatpush1.msra.mxu0 0.0
    %210 = vmatprep.subr.mxu0 0.0
    %211 = vmatpush1.msra.mxu0 0.0
    %212 = vmatprep.subr.mxu0 0.0
    %213 = vmatpush1.msra.mxu0 0.0
    %214 = vmatprep.subr.mxu0 0.0
    %215 = vmatpush1.msra.mxu0 0.0
    %216 = vmatprep.subr.mxu0 0.0
    %217 = vmatpush1.msra.mxu0 0.0
    %218 = vmatprep.subr.mxu0 0.0
    %219 = vmatpush1.msra.mxu0 0.0
    %220 = vmatprep.subr.mxu0 0.0
    %221 = vmatpush1.msra.mxu0 0.0
    %222 = vmatprep.subr.mxu0 0.0
    %223 = vmatpush1.msra.mxu0 0.0
    %224 = vmatprep.subr.mxu0 0.0
    %225 = vmatpush1.msra.mxu0 0.0
    %226 = vmatprep.subr.mxu0 0.0
    %227 = vmatpush1.msra.mxu0 0.0
    %228 = vmatprep.subr.mxu0 0.0
    %229 = vmatpush1.msra.mxu0 0.0
    %230 = vmatprep.subr.mxu0 0.0
    %231 = vmatpush1.msra.mxu0 0.0
    %232 = vmatprep.subr.mxu0 0.0
    %233 = vmatpush1.msra.mxu0 0.0
    %234 = vmatprep.subr.mxu0 0.0
    %235 = vmatpush1.msra.mxu0 0.0
    %236 = vmatprep.subr.mxu0 0.0
    %237 = vmatpush1.msra.mxu0 0.0
    %238 = vmatprep.subr.mxu0 0.0
    %239 = vmatpush1.msra.mxu0 0.0
    %240 = vmatprep.subr.mxu0 0.0
    %241 = vmatpush1.msra.mxu0 0.0
    %242 = vmatprep.subr.mxu0 0.0
    %243 = vmatpush1.msra.mxu0 0.0
    %244 = vmatprep.subr.mxu0 0.0
    %245 = vmatpush1.msra.mxu0 0.0
    %246 = vmatprep.mubr.f32.mxu0 0.0
    %247 = vmatmul.mubr.f32.gmra.mrb[0].mxu0 %v180
    %v248 = vpop.f32.mrb[0].mxu0
    %v249 = vadd.f32 %v177, %v248
    %v250 = vpop.f32.mrb[0].mxu0
    %251 = vdwg.mxu0
    %v252 = vmax.f32 %v249, 0.0
    %v253 = vlaneseq
    %v254 = vshrl.u32 %v253, 7
    %v255 = vsub.s32 0, %v254
    %v256 = vrot.slane %v52, %v255
    %v258 = vsel %vm99, %v252, 0
    %260 = vmatprep.subr.mxu0 0.0
    %261 = vmatpush1.msra.mxu0 %v50
    %262 = vmatprep.subr.mxu0 0.0
    %263 = vmatpush1.msra.mxu0 %v51
    %264 = vmatprep.subr.mxu0 0.0
    %265 = vmatpush1.msra.mxu0 0.0
    %266 = vmatprep.subr.mxu0 0.0
    %267 = vmatpush1.msra.mxu0 0.0
    %268 = vmatprep.subr.mxu0 0.0
    %269 = vmatpush1.msra.mxu0 0.0
    %270 = vmatprep.subr.mxu0 0.0
    %271 = vmatpush1.msra.mxu0 0.0
    %272 = vmatprep.subr.mxu0 0.0
    %273 = vmatpush1.msra.mxu0 0.0
    %274 = vmatprep.subr.mxu0 0.0
    %275 = vmatpush1.msra.mxu0 0.0
    %276 = vmatprep.subr.mxu0 0.0
    %277 = vmatpush1.msra.mxu0 0.0
    %278 = vmatprep.subr.mxu0 0.0
    %279 = vmatpush1.msra.mxu0 0.0
    %280 = vmatprep.subr.mxu0 0.0
    %281 = vmatpush1.msra.mxu0 0.0
    %282 = vmatprep.subr.mxu0 0.0
    %283 = vmatpush1.msra.mxu0 0.0
    %284 = vmatprep.subr.mxu0 0.0
    %285 = vmatpush1.msra.mxu0 0.0
    %286 = vmatprep.subr.mxu0 0.0
    %287 = vmatpush1.msra.mxu0 0.0
    %288 = vmatprep.subr.mxu0 0.0
    %289 = vmatpush1.msra.mxu0 0.0
    %290 = vmatprep.subr.mxu0 0.0
    %291 = vmatpush1.msra.mxu0 0.0
    %292 = vmatprep.subr.mxu0 0.0
    %293 = vmatpush1.msra.mxu0 0.0
    %294 = vmatprep.subr.mxu0 0.0
    %295 = vmatpush1.msra.mxu0 0.0
    %296 = vmatprep.subr.mxu0 0.0
    %297 = vmatpush1.msra.mxu0 0.0
    %298 = vmatprep.subr.mxu0 0.0
    %299 = vmatpush1.msra.mxu0 0.0
    %300 = vmatprep.subr.mxu0 0.0
    %301 = vmatpush1.msra.mxu0 0.0
    %302 = vmatprep.subr.mxu0 0.0
    %303 = vmatpush1.msra.mxu0 0.0
    %304 = vmatprep.subr.mxu0 0.0
    %305 = vmatpush1.msra.mxu0 0.0
    %306 = vmatprep.subr.mxu0 0.0
    %307 = vmatpush1.msra.mxu0 0.0
    %308 = vmatprep.subr.mxu0 0.0
    %309 = vmatpush1.msra.mxu0 0.0
    %310 = vmatprep.subr.mxu0 0.0
    %311 = vmatpush1.msra.mxu0 0.0
    %312 = vmatprep.subr.mxu0 0.0
    %313 = vmatpush1.msra.mxu0 0.0
    %314 = vmatprep.subr.mxu0 0.0
    %315 = vmatpush1.msra.mxu0 0.0
    %316 = vmatprep.subr.mxu0 0.0
    %317 = vmatpush1.msra.mxu0 0.0
    %318 = vmatprep.subr.mxu0 0.0
    %319 = vmatpush1.msra.mxu0 0.0
    %320 = vmatprep.subr.mxu0 0.0
    %321 = vmatpush1.msra.mxu0 0.0
    %322 = vmatprep.subr.mxu0 0.0
    %323 = vmatpush1.msra.mxu0 0.0
    %324 = vmatprep.mubr.f32.mxu0 0.0
    %325 = vmatmul.mubr.f32.gmra.mrb[0].mxu0 %v258
    %v326 = vpop.f32.mrb[0].mxu0
    %v327 = vadd.f32 %v256, %v326
    %v328 = vpop.f32.mrb[0].mxu0
    %329 = vdwg.mxu0
    %v330 = vmax.f32 %v327, 0.0
    %v331 = vlaneseq
    %v332 = vshrl.u32 %v331, 7
    %v333 = vsub.s32 0, %v332
    %v334 = vrot.slane %v57, %v333
    %vm335 = vcmask 261120
    %v337 = vsel %vm335, %v330, 0
    %339 = vmatprep.subr.mxu0 0.0
    %340 = vmatpush1.msra.mxu0 %v53
    %341 = vmatprep.subr.mxu0 0.0
    %342 = vmatpush1.msra.mxu0 %v54
    %343 = vmatprep.subr.mxu0 0.0
    %344 = vmatpush1.msra.mxu0 %v55
    %345 = vmatprep.subr.mxu0 0.0
    %346 = vmatpush1.msra.mxu0 %v56
    %347 = vmatprep.subr.mxu0 0.0
    %348 = vmatpush1.msra.mxu0 0.0
    %349 = vmatprep.subr.mxu0 0.0
    %350 = vmatpush1.msra.mxu0 0.0
    %351 = vmatprep.subr.mxu0 0.0
    %352 = vmatpush1.msra.mxu0 0.0
    %353 = vmatprep.subr.mxu0 0.0
    %354 = vmatpush1.msra.mxu0 0.0
    %355 = vmatprep.subr.mxu0 0.0
    %356 = vmatpush1.msra.mxu0 0.0
    %357 = vmatprep.subr.mxu0 0.0
    %358 = vmatpush1.msra.mxu0 0.0
    %359 = vmatprep.subr.mxu0 0.0
    %360 = vmatpush1.msra.mxu0 0.0
    %361 = vmatprep.subr.mxu0 0.0
    %362 = vmatpush1.msra.mxu0 0.0
    %363 = vmatprep.subr.mxu0 0.0
    %364 = vmatpush1.msra.mxu0 0.0
    %365 = vmatprep.subr.mxu0 0.0
    %366 = vmatpush1.msra.mxu0 0.0
    %367 = vmatprep.subr.mxu0 0.0
    %368 = vmatpush1.msra.mxu0 0.0
    %369 = vmatprep.subr.mxu0 0.0
    %370 = vmatpush1.msra.mxu0 0.0
    %371 = vmatprep.subr.mxu0 0.0
    %372 = vmatpush1.msra.mxu0 0.0
    %373 = vmatprep.subr.mxu0 0.0
    %374 = vmatpush1.msra.mxu0 0.0
    %375 = vmatprep.subr.mxu0 0.0
    %376 = vmatpush1.msra.mxu0 0.0
    %377 = vmatprep.subr.mxu0 0.0
    %378 = vmatpush1.msra.mxu0 0.0
    %379 = vmatprep.subr.mxu0 0.0
    %380 = vmatpush1.msra.mxu0 0.0
    %381 = vmatprep.subr.mxu0 0.0
    %382 = vmatpush1.msra.mxu0 0.0
    %383 = vmatprep.subr.mxu0 0.0
    %384 = vmatpush1.msra.mxu0 0.0
    %385 = vmatprep.subr.mxu0 0.0
    %386 = vmatpush1.msra.mxu0 0.0
    %387 = vmatprep.subr.mxu0 0.0
    %388 = vmatpush1.msra.mxu0 0.0
    %389 = vmatprep.subr.mxu0 0.0
    %390 = vmatpush1.msra.mxu0 0.0
    %391 = vmatprep.subr.mxu0 0.0
    %392 = vmatpush1.msra.mxu0 0.0
    %393 = vmatprep.subr.mxu0 0.0
    %394 = vmatpush1.msra.mxu0 0.0
    %395 = vmatprep.subr.mxu0 0.0
    %396 = vmatpush1.msra.mxu0 0.0
    %397 = vmatprep.subr.mxu0 0.0
    %398 = vmatpush1.msra.mxu0 0.0
    %399 = vmatprep.subr.mxu0 0.0
    %400 = vmatpush1.msra.mxu0 0.0
    %401 = vmatprep.subr.mxu0 0.0
    %402 = vmatpush1.msra.mxu0 0.0
    %403 = vmatprep.mubr.f32.mxu0 0.0
    %404 = vmatmul.mubr.f32.gmra.mrb[0].mxu0 %v337
    %v405 = vpop.f32.mrb[0].mxu0
    %v406 = vadd.f32 %v334, %v405
    %v407 = vpop.f32.mrb[0].mxu0
    %408 = vdwg.mxu0
    %v409 = vmax.f32 %v406, 0.0
    %v410 = vlaneseq
    %v411 = vshrl.u32 %v410, 7
    %v412 = vsub.s32 0, %v411
    %v413 = vrot.slane %v62, %v412
    %v415 = vsel %vm335, %v409, 0
    %417 = vmatprep.subr.mxu0 0.0
    %418 = vmatpush1.msra.mxu0 %v58
    %419 = vmatprep.subr.mxu0 0.0
    %420 = vmatpush1.msra.mxu0 %v59
    %421 = vmatprep.subr.mxu0 0.0
    %422 = vmatpush1.msra.mxu0 %v60
    %423 = vmatprep.subr.mxu0 0.0
    %424 = vmatpush1.msra.mxu0 %v61
    %425 = vmatprep.subr.mxu0 0.0
    %426 = vmatpush1.msra.mxu0 0.0
    %427 = vmatprep.subr.mxu0 0.0
    %428 = vmatpush1.msra.mxu0 0.0
    %429 = vmatprep.subr.mxu0 0.0
    %430 = vmatpush1.msra.mxu0 0.0
    %431 = vmatprep.subr.mxu0 0.0
    %432 = vmatpush1.msra.mxu0 0.0
    %433 = vmatprep.subr.mxu0 0.0
    %434 = vmatpush1.msra.mxu0 0.0
    %435 = vmatprep.subr.mxu0 0.0
    %436 = vmatpush1.msra.mxu0 0.0
    %437 = vmatprep.subr.mxu0 0.0
    %438 = vmatpush1.msra.mxu0 0.0
    %439 = vmatprep.subr.mxu0 0.0
    %440 = vmatpush1.msra.mxu0 0.0
    %441 = vmatprep.subr.mxu0 0.0
    %442 = vmatpush1.msra.mxu0 0.0
    %443 = vmatprep.subr.mxu0 0.0
    %444 = vmatpush1.msra.mxu0 0.0
    %445 = vmatprep.subr.mxu0 0.0
    %446 = vmatpush1.msra.mxu0 0.0
    %447 = vmatprep.subr.mxu0 0.0
    %448 = vmatpush1.msra.mxu0 0.0
    %449 = vmatprep.subr.mxu0 0.0
    %450 = vmatpush1.msra.mxu0 0.0
    %451 = vmatprep.subr.mxu0 0.0
    %452 = vmatpush1.msra.mxu0 0.0
    %453 = vmatprep.subr.mxu0 0.0
    %454 = vmatpush1.msra.mxu0 0.0
    %455 = vmatprep.subr.mxu0 0.0
    %456 = vmatpush1.msra.mxu0 0.0
    %457 = vmatprep.subr.mxu0 0.0
    %458 = vmatpush1.msra.mxu0 0.0
    %459 = vmatprep.subr.mxu0 0.0
    %460 = vmatpush1.msra.mxu0 0.0
    %461 = vmatprep.subr.mxu0 0.0
    %462 = vmatpush1.msra.mxu0 0.0
    %463 = vmatprep.subr.mxu0 0.0
    %464 = vmatpush1.msra.mxu0 0.0
    %465 = vmatprep.subr.mxu0 0.0
    %466 = vmatpush1.msra.mxu0 0.0
    %467 = vmatprep.subr.mxu0 0.0
    %468 = vmatpush1.msra.mxu0 0.0
    %469 = vmatprep.subr.mxu0 0.0
    %470 = vmatpush1.msra.mxu0 0.0
    %471 = vmatprep.subr.mxu0 0.0
    %472 = vmatpush1.msra.mxu0 0.0
    %473 = vmatprep.subr.mxu0 0.0
    %474 = vmatpush1.msra.mxu0 0.0
    %475 = vmatprep.subr.mxu0 0.0
    %476 = vmatpush1.msra.mxu0 0.0
    %477 = vmatprep.subr.mxu0 0.0
    %478 = vmatpush1.msra.mxu0 0.0
    %479 = vmatprep.subr.mxu0 0.0
    %480 = vmatpush1.msra.mxu0 0.0
    %481 = vmatprep.mubr.f32.mxu0 0.0
    %482 = vmatmul.mubr.f32.gmra.mrb[0].mxu0 %v415
    %v483 = vpop.f32.mrb[0].mxu0
    %v484 = vadd.f32 %v413, %v483
    %v485 = vpop.f32.mrb[0].mxu0
    %486 = vdwg.mxu0
    %v487 = vmax.f32 %v484, 0.0
    %v488 = vlaneseq
    %v489 = vshrl.u32 %v488, 7
    %v490 = vsub.s32 0, %v489
    %v491 = vrot.slane %v67, %v490
    %v493 = vsel %vm335, %v487, 0
    %495 = vmatprep.subr.mxu0 0.0
    %496 = vmatpush1.msra.mxu0 %v63
    %497 = vmatprep.subr.mxu0 0.0
    %498 = vmatpush1.msra.mxu0 %v64
    %499 = vmatprep.subr.mxu0 0.0
    %500 = vmatpush1.msra.mxu0 %v65
    %501 = vmatprep.subr.mxu0 0.0
    %502 = vmatpush1.msra.mxu0 %v66
    %503 = vmatprep.subr.mxu0 0.0
    %504 = vmatpush1.msra.mxu0 0.0
    %505 = vmatprep.subr.mxu0 0.0
    %506 = vmatpush1.msra.mxu0 0.0
    %507 = vmatprep.subr.mxu0 0.0
    %508 = vmatpush1.msra.mxu0 0.0
    %509 = vmatprep.subr.mxu0 0.0
    %510 = vmatpush1.msra.mxu0 0.0
    %511 = vmatprep.subr.mxu0 0.0
    %512 = vmatpush1.msra.mxu0 0.0
    %513 = vmatprep.subr.mxu0 0.0
    %514 = vmatpush1.msra.mxu0 0.0
    %515 = vmatprep.subr.mxu0 0.0
    %516 = vmatpush1.msra.mxu0 0.0
    %517 = vmatprep.subr.mxu0 0.0
    %518 = vmatpush1.msra.mxu0 0.0
    %519 = vmatprep.subr.mxu0 0.0
    %520 = vmatpush1.msra.mxu0 0.0
    %521 = vmatprep.subr.mxu0 0.0
    %522 = vmatpush1.msra.mxu0 0.0
    %523 = vmatprep.subr.mxu0 0.0
    %524 = vmatpush1.msra.mxu0 0.0
    %525 = vmatprep.subr.mxu0 0.0
    %526 = vmatpush1.msra.mxu0 0.0
    %527 = vmatprep.subr.mxu0 0.0
    %528 = vmatpush1.msra.mxu0 0.0
    %529 = vmatprep.subr.mxu0 0.0
    %530 = vmatpush1.msra.mxu0 0.0
    %531 = vmatprep.subr.mxu0 0.0
    %532 = vmatpush1.msra.mxu0 0.0
    %533 = vmatprep.subr.mxu0 0.0
    %534 = vmatpush1.msra.mxu0 0.0
    %535 = vmatprep.subr.mxu0 0.0
    %536 = vmatpush1.msra.mxu0 0.0
    %537 = vmatprep.subr.mxu0 0.0
    %538 = vmatpush1.msra.mxu0 0.0
    %539 = vmatprep.subr.mxu0 0.0
    %540 = vmatpush1.msra.mxu0 0.0
    %541 = vmatprep.subr.mxu0 0.0
    %542 = vmatpush1.msra.mxu0 0.0
    %543 = vmatprep.subr.mxu0 0.0
    %544 = vmatpush1.msra.mxu0 0.0
    %545 = vmatprep.subr.mxu0 0.0
    %546 = vmatpush1.msra.mxu0 0.0
    %547 = vmatprep.subr.mxu0 0.0
    %548 = vmatpush1.msra.mxu0 0.0
    %549 = vmatprep.subr.mxu0 0.0
    %550 = vmatpush1.msra.mxu0 0.0
    %551 = vmatprep.subr.mxu0 0.0
    %552 = vmatpush1.msra.mxu0 0.0
    %553 = vmatprep.subr.mxu0 0.0
    %554 = vmatpush1.msra.mxu0 0.0
    %555 = vmatprep.subr.mxu0 0.0
    %556 = vmatpush1.msra.mxu0 0.0
    %557 = vmatprep.subr.mxu0 0.0
    %558 = vmatpush1.msra.mxu0 0.0
    %559 = vmatprep.mubr.f32.mxu0 0.0
    %560 = vmatmul.mubr.f32.gmra.mrb[0].mxu0 %v493
    %v561 = vpop.f32.mrb[0].mxu0
    %v562 = vadd.f32 %v491, %v561
    %v563 = vpop.f32.mrb[0].mxu0
    %564 = vdwg.mxu0
    %v565 = vmax.f32 %v562, 0.0
    %v566 = vlaneseq
    %v567 = vshrl.u32 %v566, 7
    %v568 = vsub.s32 0, %v567
    %v569 = vrot.slane %v80, %v568
    %vm570 = vcmask 785408
    %v572 = vsel %vm570, %v565, 0
    %574 = vmatprep.subr.mxu0 0.0
    %575 = vmatpush1.msra.mxu0 %v68
    %576 = vmatprep.subr.mxu0 0.0
    %577 = vmatpush1.msra.mxu0 %v69
    %578 = vmatprep.subr.mxu0 0.0
    %579 = vmatpush1.msra.mxu0 %v70
    %580 = vmatprep.subr.mxu0 0.0
    %581 = vmatpush1.msra.mxu0 %v71
    %582 = vmatprep.subr.mxu0 0.0
    %583 = vmatpush1.msra.mxu0 %v72
    %584 = vmatprep.subr.mxu0 0.0
    %585 = vmatpush1.msra.mxu0 %v73
    %586 = vmatprep.subr.mxu0 0.0
    %587 = vmatpush1.msra.mxu0 %v74
    %588 = vmatprep.subr.mxu0 0.0
    %589 = vmatpush1.msra.mxu0 %v75
    %590 = vmatprep.subr.mxu0 0.0
    %591 = vmatpush1.msra.mxu0 %v76
    %592 = vmatprep.subr.mxu0 0.0
    %593 = vmatpush1.msra.mxu0 %v77
    %594 = vmatprep.subr.mxu0 0.0
    %595 = vmatpush1.msra.mxu0 %v78
    %596 = vmatprep.subr.mxu0 0.0
    %597 = vmatpush1.msra.mxu0 %v79
    %598 = vmatprep.subr.mxu0 0.0
    %599 = vmatpush1.msra.mxu0 0.0
    %600 = vmatprep.subr.mxu0 0.0
    %601 = vmatpush1.msra.mxu0 0.0
    %602 = vmatprep.subr.mxu0 0.0
    %603 = vmatpush1.msra.mxu0 0.0
    %604 = vmatprep.subr.mxu0 0.0
    %605 = vmatpush1.msra.mxu0 0.0
    %606 = vmatprep.subr.mxu0 0.0
    %607 = vmatpush1.msra.mxu0 0.0
    %608 = vmatprep.subr.mxu0 0.0
    %609 = vmatpush1.msra.mxu0 0.0
    %610 = vmatprep.subr.mxu0 0.0
    %611 = vmatpush1.msra.mxu0 0.0
    %612 = vmatprep.subr.mxu0 0.0
    %613 = vmatpush1.msra.mxu0 0.0
    %614 = vmatprep.subr.mxu0 0.0
    %615 = vmatpush1.msra.mxu0 0.0
    %616 = vmatprep.subr.mxu0 0.0
    %617 = vmatpush1.msra.mxu0 0.0
    %618 = vmatprep.subr.mxu0 0.0
    %619 = vmatpush1.msra.mxu0 0.0
    %620 = vmatprep.subr.mxu0 0.0
    %621 = vmatpush1.msra.mxu0 0.0
    %622 = vmatprep.subr.mxu0 0.0
    %623 = vmatpush1.msra.mxu0 0.0
    %624 = vmatprep.subr.mxu0 0.0
    %625 = vmatpush1.msra.mxu0 0.0
    %626 = vmatprep.subr.mxu0 0.0
    %627 = vmatpush1.msra.mxu0 0.0
    %628 = vmatprep.subr.mxu0 0.0
    %629 = vmatpush1.msra.mxu0 0.0
    %630 = vmatprep.subr.mxu0 0.0
    %631 = vmatpush1.msra.mxu0 0.0
    %632 = vmatprep.subr.mxu0 0.0
    %633 = vmatpush1.msra.mxu0 0.0
    %634 = vmatprep.subr.mxu0 0.0
    %635 = vmatpush1.msra.mxu0 0.0
    %636 = vmatprep.subr.mxu0 0.0
    %637 = vmatpush1.msra.mxu0 0.0
    %638 = vmatprep.mubr.f32.mxu0 0.0
    %639 = vmatmul.mubr.f32.gmra.mrb[0].mxu0 %v572
    %v640 = vpop.f32.mrb[0].mxu0
    %v641 = vadd.f32 %v569, %v640
    %v642 = vpop.f32.mrb[0].mxu0
    %643 = vdwg.mxu0
    %v644 = vmax.f32 %v641, 0.0
    %v645 = vlaneseq
    %v646 = vshrl.u32 %v645, 7
    %v647 = vsub.s32 0, %v646
    %v648 = vrot.slane %v93, %v647
    %v650 = vsel %vm570, %v644, 0
    %652 = vmatprep.subr.mxu0 0.0
    %653 = vmatpush1.msra.mxu0 %v81
    %654 = vmatprep.subr.mxu0 0.0
    %655 = vmatpush1.msra.mxu0 %v82
    %656 = vmatprep.subr.mxu0 0.0
    %657 = vmatpush1.msra.mxu0 %v83
    %658 = vmatprep.subr.mxu0 0.0
    %659 = vmatpush1.msra.mxu0 %v84
    %660 = vmatprep.subr.mxu0 0.0
    %661 = vmatpush1.msra.mxu0 %v85
    %662 = vmatprep.subr.mxu0 0.0
    %663 = vmatpush1.msra.mxu0 %v86
    %664 = vmatprep.subr.mxu0 0.0
    %665 = vmatpush1.msra.mxu0 %v87
    %666 = vmatprep.subr.mxu0 0.0
    %667 = vmatpush1.msra.mxu0 %v88
    %668 = vmatprep.subr.mxu0 0.0
    %669 = vmatpush1.msra.mxu0 %v89
    %670 = vmatprep.subr.mxu0 0.0
    %671 = vmatpush1.msra.mxu0 %v90
    %672 = vmatprep.subr.mxu0 0.0
    %673 = vmatpush1.msra.mxu0 %v91
    %674 = vmatprep.subr.mxu0 0.0
    %675 = vmatpush1.msra.mxu0 %v92
    %676 = vmatprep.subr.mxu0 0.0
    %677 = vmatpush1.msra.mxu0 0.0
    %678 = vmatprep.subr.mxu0 0.0
    %679 = vmatpush1.msra.mxu0 0.0
    %680 = vmatprep.subr.mxu0 0.0
    %681 = vmatpush1.msra.mxu0 0.0
    %682 = vmatprep.subr.mxu0 0.0
    %683 = vmatpush1.msra.mxu0 0.0
    %684 = vmatprep.subr.mxu0 0.0
    %685 = vmatpush1.msra.mxu0 0.0
    %686 = vmatprep.subr.mxu0 0.0
    %687 = vmatpush1.msra.mxu0 0.0
    %688 = vmatprep.subr.mxu0 0.0
    %689 = vmatpush1.msra.mxu0 0.0
    %690 = vmatprep.subr.mxu0 0.0
    %691 = vmatpush1.msra.mxu0 0.0
    %692 = vmatprep.subr.mxu0 0.0
    %693 = vmatpush1.msra.mxu0 0.0
    %694 = vmatprep.subr.mxu0 0.0
    %695 = vmatpush1.msra.mxu0 0.0
    %696 = vmatprep.subr.mxu0 0.0
    %697 = vmatpush1.msra.mxu0 0.0
    %698 = vmatprep.subr.mxu0 0.0
    %699 = vmatpush1.msra.mxu0 0.0
    %700 = vmatprep.subr.mxu0 0.0
    %701 = vmatpush1.msra.mxu0 0.0
    %702 = vmatprep.subr.mxu0 0.0
    %703 = vmatpush1.msra.mxu0 0.0
    %704 = vmatprep.subr.mxu0 0.0
    %705 = vmatpush1.msra.mxu0 0.0
    %706 = vmatprep.subr.mxu0 0.0
    %707 = vmatpush1.msra.mxu0 0.0
    %708 = vmatprep.subr.mxu0 0.0
    %709 = vmatpush1.msra.mxu0 0.0
    %710 = vmatprep.subr.mxu0 0.0
    %711 = vmatpush1.msra.mxu0 0.0
    %712 = vmatprep.subr.mxu0 0.0
    %713 = vmatpush1.msra.mxu0 0.0
    %714 = vmatprep.subr.mxu0 0.0
    %715 = vmatpush1.msra.mxu0 0.0
    %716 = vmatprep.mubr.f32.mxu0 0.0
    %717 = vmatmul.mubr.f32.gmra.mrb[0].mxu0 %v650
    %v718 = vpop.f32.mrb[0].mxu0
    %v719 = vadd.f32 %v648, %v718
    %v720 = vpop.f32.mrb[0].mxu0
    %721 = vdwg.mxu0
    %vm722 = vcmask 72704
    %723 = vst.msk [vmem:[#allocation7] sm:$0xff] %vm722, %v719
    // Predicated region
    $region18: #{tpu_custom_call.1} parent=1 // pred_check
      _
    $region19: #{tpu_custom_call.1} parent=1 // pred_check_branch
      %725 = sbr.rel (0) target = $region21
    $region20: #{tpu_custom_call.1} parent=1 // pred_region
      %s727 = ssub.s32 128, 128
      %728 = vsyncadd [#allocation4], %s727
      %s730 = sshll.u32 [#allocation7], 4
      %s731 = int_to_ptr.vmem [resolvable:$true] %s730
      %733 = dma.vmem_to_hbm [thread:$0]  %s731, 128, %s2, [#allocation4]
    $region21: #{tpu_custom_call.1} parent=1 // pred_fallthru
      _
    // Predicated region
    $region22: #{tpu_custom_call.1} parent=1 // pred_check
      _
    $region23: #{tpu_custom_call.1} parent=1 // pred_check_branch
      %735 = sbr.rel (0) target = $region25
    $region24: #{tpu_custom_call.1} parent=1 // pred_region
      %736 = dma.done [#allocation4], 128
    $region25: #{tpu_custom_call.1} parent=1 // pred_fallthru
      _
    %737 = vsyncpa [#allocation3], 1
    %738 = vsyncpa [#allocation6], 1
    %739 = vsyncpa [#allocation4], 1

</llo_original>
